<compile_context>
chip_gen: v7x
topology: tpu7x:2x2x1
jax: 0.10.0
libtpu: 0.0.40
codegen_flags: <defaults>
</compile_context>

<pallas_src>
import math

import jax
import jax.numpy as jnp
from jax.experimental import pallas as pl
from jax.experimental.pallas import tpu as pltpu

_MiB = 1024 * 1024


def _round_up(x, m):
    return (x + m - 1) // m * m


def _pad_to(a, shape):
    pads = [(0, s - d) for d, s in zip(a.shape, shape)]
    if any(p[1] for p in pads):
        return jnp.pad(a, pads)
    return a


def _vmem_capacity_bytes():
    """Physical VMEM of the attached TPU (per core); conservative default if unknown."""
    try:
        return int(pltpu.get_tpu_info().vmem_capacity_bytes)
    except Exception:
        return 64 * _MiB  # v7x per-TC size: safe lower bound for all generations


def _weight_spec(shape):
    """Resident weight block: constant index_map + single-buffered (no re-DMA, 1x VMEM)."""
    try:
        return pl.BlockSpec(shape, lambda i: (0, 0), pipeline_mode=pl.Buffered(1))
    except TypeError:  # older jax without pipeline_mode kwarg
        return pl.BlockSpec(shape, lambda i: (0, 0))


# ----------------------------------------------------------------------------
# Fused path: all weights resident in VMEM, one grid axis over batch tiles.
# ----------------------------------------------------------------------------
def _make_mlp_kernel(n_layers, downcast_intermediates):
    def kernel(*refs):
        x_ref = refs[0]
        w_refs = refs[1:1 + n_layers]
        o_ref = refs[-1]

        h = x_ref[...]
        for li, w_ref in enumerate(w_refs):
            w = w_ref[...]
            h = jnp.dot(h.astype(w.dtype), w, preferred_element_type=jnp.float32)
            if downcast_intermediates and li != n_layers - 1:
                # Early downcast: halves the live intermediate (VPU cast hides under MXU).
                h = h.astype(w.dtype)
        o_ref[...] = h.astype(o_ref.dtype)

    return kernel


# ----------------------------------------------------------------------------
# Fallback path: per-layer M/N/K-tiled matmul with a VMEM f32 accumulator.
# Used when the full weight set does not fit the per-core VMEM budget (v7x).
# ----------------------------------------------------------------------------
def _matmul_kernel(a_ref, b_ref, o_ref, acc_ref):
    @pl.when(pl.program_id(2) == 0)
    def _():
        acc_ref[...] = jnp.zeros_like(acc_ref)

    acc_ref[...] += jnp.dot(a_ref[...], b_ref[...],
                            preferred_element_type=jnp.float32)

    @pl.when(pl.program_id(2) == pl.num_programs(2) - 1)
    def _():
        o_ref[...] = acc_ref[...].astype(o_ref.dtype)


def _pick_tile(dim, preferred):
    """Largest multiple of 128 that is <= preferred and divides dim (dim % 128 == 0)."""
    t = min(preferred, dim)
    t = max(128, t - t % 128)
    while dim % t:
        t -= 128
    return t


def _tiled_matmul(a, w, out_dtype, *, tm, vmem_limit):
    M, K = a.shape
    _, N = w.shape
    tn = _pick_tile(N, 512)
    tk = _pick_tile(K, 512)
    grid = (M // tm, N // tn, K // tk)
    return pl.pallas_call(
        _matmul_kernel,
        out_shape=jax.ShapeDtypeStruct((M, N), out_dtype),
        grid_spec=pltpu.PrefetchScalarGridSpec(
            num_scalar_prefetch=0,
            grid=grid,
            in_specs=[pl.BlockSpec((tm, tk), lambda i, j, k: (i, k)),
                      pl.BlockSpec((tk, tn), lambda i, j, k: (k, j))],
            out_specs=pl.BlockSpec((tm, tn), lambda i, j, k: (i, j)),
            scratch_shapes=[pltpu.VMEM((tm, tn), jnp.float32)],
        ),
        compiler_params=pltpu.CompilerParams(
            dimension_semantics=("parallel", "parallel", "arbitrary"),
            vmem_limit_bytes=vmem_limit,
        ),
    )(a, w)


# ----------------------------------------------------------------------------
# Weight preparation (hoisted out of the forward hot path).
# ----------------------------------------------------------------------------
def prepare_weights(weights, compute_dtype=jnp.bfloat16):
    """Transpose (out,in)->(in,out), pad feature dims to multiples of 128, cast to
    the MXU compute dtype. Returns (prepared_weights, true_output_dim)."""
    prepped = []
    for w in weights:
        out_d, in_d = w.shape
        wt = jnp.asarray(w).T.astype(compute_dtype)          # (in, out)
        wt = _pad_to(wt, (_round_up(in_d, 128), _round_up(out_d, 128)))
        prepped.append(wt)
    return prepped, weights[-1].shape[0]


# ----------------------------------------------------------------------------
# Forward pass.
# ----------------------------------------------------------------------------
def linear_network_forward(x, prepped_weights, d_out, *, tile_b=None,
                           out_dtype=jnp.float32, downcast_intermediates=True,
                           vmem_budget_bytes=None):
    """out = x @ W1 @ W2 @ ... @ Wn (no biases, no activations)."""
    B, d_in = x.shape
    compute_dtype = prepped_weights[0].dtype
    d_in_pad = prepped_weights[0].shape[0]
    d_out_pad = prepped_weights[-1].shape[1]
    assert d_in <= d_in_pad

    itemsize = jnp.dtype(compute_dtype).itemsize
    out_itemsize = jnp.dtype(out_dtype).itemsize

    # Generation-aware VMEM budget/limit (v5e/v6e: 128 MiB, v7x: 64 MiB per TC).
    capacity = _vmem_capacity_bytes()
    if vmem_budget_bytes is None:
        vmem_budget_bytes = int(0.75 * capacity)
    vmem_budget_bytes = min(vmem_budget_bytes, capacity - 8 * _MiB)
    vmem_limit = int(max(32 * _MiB,
                         min(vmem_budget_bytes + 8 * _MiB, capacity - 8 * _MiB)))

    # Desired batch tile: big enough to amortize per-grid-step overhead and fill the MXU.
    if tile_b is None:
        if B >= 512:
            tile_b = 512
        elif B >= 256:
            tile_b = 256
        else:
            tile_b = _round_up(max(B, 8), 8)
    tile_b = max(8, _round_up(tile_b, 8))

    weight_bytes = sum(w.size * w.dtype.itemsize for w in prepped_weights)
    widest = max(w.shape[1] for w in prepped_weights)

    def _fused_vmem_estimate(tb):
        act_in = 2 * tb * d_in_pad * itemsize           # double-buffered input blocks
        act_out = 2 * tb * d_out_pad * out_itemsize     # double-buffered output blocks
        inter = tb * widest * (4 + itemsize)            # f32 dot result + downcast copy
        return act_in + act_out + weight_bytes + inter  # weights: single-buffered (1x)

    while tile_b > 8 and _fused_vmem_estimate(tile_b) > vmem_budget_bytes:
        tile_b = max(8, _round_up(tile_b // 2, 8))

    # Pad batch only to a multiple of 8, then balance tiles so waste < 8 rows per tile.
    B8 = _round_up(B, 8)
    tile_b = min(tile_b, B8)
    n_tiles = -(-B8 // tile_b)
    tile_b = _round_up(-(-B8 // n_tiles), 8)
    B_pad = tile_b * n_tiles

    x_p = _pad_to(x.astype(compute_dtype), (B_pad, d_in_pad))

    if _fused_vmem_estimate(tile_b) <= vmem_budget_bytes:
        # ---- fused path: weights resident, one matmul chain per batch tile ----
        in_specs = [pl.BlockSpec((tile_b, d_in_pad), lambda i: (i, 0))]
        for w in prepped_weights:
            in_specs.append(_weight_spec(w.shape))
        out_specs = pl.BlockSpec((tile_b, d_out_pad), lambda i: (i, 0))

        kernel = _make_mlp_kernel(len(prepped_weights), downcast_intermediates)
        out = pl.pallas_call(
            kernel,
            out_shape=jax.ShapeDtypeStruct((B_pad, d_out_pad), out_dtype),
            grid_spec=pltpu.PrefetchScalarGridSpec(
                num_scalar_prefetch=0,
                grid=(n_tiles,),
                in_specs=in_specs,
                out_specs=out_specs,
            ),
            compiler_params=pltpu.CompilerParams(
                dimension_semantics=("parallel",),
                vmem_limit_bytes=vmem_limit,
            ),
        )(x_p, *prepped_weights)
    else:
        # ---- fallback path: weights too large for resident VMEM (e.g. v7x 64 MiB);
        #      per-layer M/N/K-tiled matmul with f32 accumulation ----
        tm = _round_up(min(tile_b, 256), 8)
        while B_pad % tm:
            tm -= 8
        tm = max(tm, 8)
        h = x_p
        n_layers = len(prepped_weights)
        for li, w in enumerate(prepped_weights):
            is_last = li == n_layers - 1
            layer_dtype = out_dtype if is_last else (
                compute_dtype if downcast_intermediates else jnp.float32)
            h = _tiled_matmul(h, w, layer_dtype, tm=tm, vmem_limit=vmem_limit)
        out = h

    # Slice back only if padding was actually added (avoids a pure-bandwidth epilogue).
    if B_pad != B or d_out_pad != d_out:
        out = out[:B, :d_out]
    return out


def init_linear_network_params(dimensions, key):
    """nn.Linear default init U(-1/sqrt(fan_in), 1/sqrt(fan_in)); PyTorch (out,in) layout."""
    weights = []
    for i in range(1, len(dimensions)):
        key, sub = jax.random.split(key)
        bound = 1.0 / math.sqrt(dimensions[i - 1])
        w = jax.random.uniform(
            sub, (dimensions[i], dimensions[i - 1]),
            dtype=jnp.float32, minval=-bound, maxval=bound,
        )
        weights.append(w)
    return weights


if __name__ == "__main__":
    # dimensions[0] = input dim, dimensions[-1] = output dim
    dimensions = [16, 32, 64, 8]
    batch = 16

    key = jax.random.PRNGKey(0)
    key, xkey = jax.random.split(key)
    x = jax.random.normal(xkey, (batch, dimensions[0]), dtype=jnp.float32)

    weights = init_linear_network_params(dimensions, key)

    # One-time preparation (transpose + lane-pad + bf16 cast) — hoisted out of hot path.
    prepped, d_out = prepare_weights(weights, compute_dtype=jnp.bfloat16)

    out = linear_network_forward(x, prepped, d_out)
    out = jax.block_until_ready(out)

    # Reference check in plain JAX f32 (same semantics as the PyTorch forward).
    # Tolerance loosened because the kernel uses bf16 matmul inputs (f32 accumulate).
    ref = x
    for w in weights:
        ref = ref @ w.T
    assert out.shape == (batch, dimensions[-1])
    assert jnp.allclose(out, ref, atol=5e-2, rtol=5e-2), (
        f"max abs err {jnp.max(jnp.abs(out - ref))}")

    print("KERNEL_OK")
</pallas_src>

<mosaic_0001>
module attributes {stable_mosaic.version = 11 : i64} {
  func.func @kernel(%arg0: i32, %arg1: memref<16x128xbf16, #tpu.memory_space<vmem>>, %arg2: memref<128x128xbf16, #tpu.memory_space<vmem>>, %arg3: memref<128x128xbf16, #tpu.memory_space<vmem>>, %arg4: memref<128x128xbf16, #tpu.memory_space<vmem>>, %arg5: memref<16x128xf32, #tpu.memory_space<vmem>>) attributes {dimension_semantics = [#tpu.dimension_semantics<parallel>], iteration_bounds = array<i64: 1>, scalar_prefetch = 0 : i64, scratch_operands = 0 : i64, tpu.core_type = #tpu.core_type<tc>, window_params = [{transform_indices = @transform_0, window_bounds = array<i64: 16, 128>}, {pipeline_mode = #tpu.pipeline_mode<synchronous>, transform_indices = @transform_1, window_bounds = array<i64: 128, 128>}, {pipeline_mode = #tpu.pipeline_mode<synchronous>, transform_indices = @transform_2, window_bounds = array<i64: 128, 128>}, {pipeline_mode = #tpu.pipeline_mode<synchronous>, transform_indices = @transform_3, window_bounds = array<i64: 128, 128>}, {transform_indices = @transform_4, window_bounds = array<i64: 16, 128>}]} {
    %c0 = arith.constant 0 : index
    %c0_0 = arith.constant 0 : index
    %0 = vector.load %arg1[%c0, %c0_0] : memref<16x128xbf16, #tpu.memory_space<vmem>>, vector<16x128xbf16>
    %c0_1 = arith.constant 0 : index
    %c0_2 = arith.constant 0 : index
    %1 = vector.load %arg2[%c0_1, %c0_2] : memref<128x128xbf16, #tpu.memory_space<vmem>>, vector<128x128xbf16>
    %cst = arith.constant dense<0.000000e+00> : vector<16x128xf32>
    %2 = tpu.matmul %0, %1, %cst {dimension_numbers = #tpu.dot_dimension_numbers<[1], [0], [0], [1], [0, 0, 1, 1], [], []>} : vector<16x128xbf16>, vector<128x128xbf16>, vector<16x128xf32> -> vector<16x128xf32>
    %3 = arith.truncf %2 : vector<16x128xf32> to vector<16x128xbf16>
    %c0_3 = arith.constant 0 : index
    %c0_4 = arith.constant 0 : index
    %4 = vector.load %arg3[%c0_3, %c0_4] : memref<128x128xbf16, #tpu.memory_space<vmem>>, vector<128x128xbf16>
    %cst_5 = arith.constant dense<0.000000e+00> : vector<16x128xf32>
    %5 = tpu.matmul %3, %4, %cst_5 {dimension_numbers = #tpu.dot_dimension_numbers<[1], [0], [0], [1], [0, 0, 1, 1], [], []>} : vector<16x128xbf16>, vector<128x128xbf16>, vector<16x128xf32> -> vector<16x128xf32>
    %6 = arith.truncf %5 : vector<16x128xf32> to vector<16x128xbf16>
    %c0_6 = arith.constant 0 : index
    %c0_7 = arith.constant 0 : index
    %7 = vector.load %arg4[%c0_6, %c0_7] : memref<128x128xbf16, #tpu.memory_space<vmem>>, vector<128x128xbf16>
    %cst_8 = arith.constant dense<0.000000e+00> : vector<16x128xf32>
    %8 = tpu.matmul %6, %7, %cst_8 {dimension_numbers = #tpu.dot_dimension_numbers<[1], [0], [0], [1], [0, 0, 1, 1], [], []>} : vector<16x128xbf16>, vector<128x128xbf16>, vector<16x128xf32> -> vector<16x128xf32>
    %c0_9 = arith.constant 0 : index
    %c0_10 = arith.constant 0 : index
    %9 = vector.load %arg5[%c0_9, %c0_10] : memref<16x128xf32, #tpu.memory_space<vmem>>, vector<16x128xf32>
    tpu.vector_store %arg5[%c0_9, %c0_10], %8 {strides = array<i32>} : memref<16x128xf32, #tpu.memory_space<vmem>>, vector<16x128xf32>,
    return
  }
  func.func @transform_0(%arg0: i32) -> (i32, i32) {
    %c0_i32 = arith.constant 0 : i32
    %c0_i32_0 = arith.constant 0 : i32
    return %arg0, %c0_i32 : i32, i32
  }
  func.func @transform_1(%arg0: i32) -> (i32, i32) {
    %c0_i32 = arith.constant 0 : i32
    %c0_i32_0 = arith.constant 0 : i32
    %c0_i32_1 = arith.constant 0 : i32
    return %c0_i32, %c0_i32_0 : i32, i32
  }
  func.func @transform_2(%arg0: i32) -> (i32, i32) {
    %c0_i32 = arith.constant 0 : i32
    %c0_i32_0 = arith.constant 0 : i32
    %c0_i32_1 = arith.constant 0 : i32
    return %c0_i32, %c0_i32_0 : i32, i32
  }
  func.func @transform_3(%arg0: i32) -> (i32, i32) {
    %c0_i32 = arith.constant 0 : i32
    %c0_i32_0 = arith.constant 0 : i32
    %c0_i32_1 = arith.constant 0 : i32
    return %c0_i32, %c0_i32_0 : i32, i32
  }
  func.func @transform_4(%arg0: i32) -> (i32, i32) {
    %c0_i32 = arith.constant 0 : i32
    %c0_i32_0 = arith.constant 0 : i32
    return %arg0, %c0_i32 : i32, i32
  }
}

</mosaic_0001>

<llo_original>
// kernel: tpu_custom_call.1
$region0: #{tpu_custom_call.1}
  #allocation0 [shape = 'u32[]', space=smem, size = 0x4, offset = 0x4, fixed_abs, tag = 'smem constant byte address 0x4 - core index']
  #allocation1 [shape = 'u32[144,128]{1,0:T(1,128)}', space=vmem, size = 0x12000, scoped, tag = 'internal scratch']
  %s0 = inlined_call_operand.hbm [shape: bf16[16,128], index: 0, kind: input, shape index: {}]
  %s1 = inlined_call_operand.hbm [shape: bf16[128,128], index: 1, kind: input, shape index: {}]
  %s2 = inlined_call_operand.hbm [shape: bf16[128,128], index: 2, kind: input, shape index: {}]
  %s3 = inlined_call_operand.hbm [shape: bf16[128,128], index: 3, kind: input, shape index: {}]
  %s4 = inlined_call_operand.hbm [shape: f32[16,128], index: 4, kind: output, shape index: {}]
  %s5 = sld [smem:[#allocation0]]
  $region42: #{tpu_custom_call.1} parent=0
    _
  %s7 = ssub.s32 1, %s5
  %s8 = scalar_select 0, %s7, %s5
  $region1: #{tpu_custom_call.1} parent=0
    #allocation2 [shape = 'u8[4096]{0}', space=vmem, size = 0x1000, scoped, tag = 'input window, operand 0, single buffered']
    #allocation3 [shape = 's32[1]{0}', space=sflag, size = 0x4, scoped, tag = 'scoped memory for tpu_custom_call.1']
    #allocation4 [shape = 's32[1]{0}', space=sflag, size = 0x4, scoped, tag = 'scoped memory for tpu_custom_call.1']
    #allocation5 [shape = 'u8[32768]{0}', space=vmem, size = 0x8000, scoped, tag = 'input window, operand 1, single buffered']
    #allocation6 [shape = 's32[1]{0}', space=sflag, size = 0x4, scoped, tag = 'scoped memory for tpu_custom_call.1']
    #allocation7 [shape = 'u8[32768]{0}', space=vmem, size = 0x8000, scoped, tag = 'input window, operand 2, single buffered']
    #allocation8 [shape = 'u8[32768]{0}', space=vmem, size = 0x8000, scoped, tag = 'input window, operand 3, single buffered']
    #allocation9 [shape = 's32[1]{0}', space=sflag, size = 0x4, scoped, tag = 'scoped memory for tpu_custom_call.1']
    #allocation10 [shape = 'u8[8192]{0}', space=vmem, size = 0x2000, scoped, tag = 'output window, operand 0, single buffered']
    %9 = vsyncpa [#allocation3], 0
    %10 = vsyncpa [#allocation6], 0
    %11 = vsyncpa [#allocation9], 0
    %12 = vsyncpa [#allocation4], 0
    // Predicated region
    $region2: #{tpu_custom_call.1} parent=1 // pred_check
      _
    $region3: #{tpu_custom_call.1} parent=1 // pred_check_branch
      %14 = sbr.rel (0) target = $region5
    $region4: #{tpu_custom_call.1} parent=1 // pred_region
      %s16 = ssub.s32 128, 128
      %17 = vsyncadd [#allocation3], %s16
      %s18 = sshll.u32 [#allocation2], 4
      %s19 = int_to_ptr.vmem [resolvable:$true] %s18
      %24 = dma.hbm_to_vmem [thread:$0]  %s0, 128, %s19, [#allocation3], 64, 64, 4
    $region5: #{tpu_custom_call.1} parent=1 // pred_fallthru
      _
    // Predicated region
    $region6: #{tpu_custom_call.1} parent=1 // pred_check
      _
    $region7: #{tpu_custom_call.1} parent=1 // pred_check_branch
      %26 = sbr.rel (0) target = $region9
    $region8: #{tpu_custom_call.1} parent=1 // pred_region
      %s28 = ssub.s32 1024, 1024
      %29 = vsyncadd [#allocation6], %s28
      %s30 = sshll.u32 [#allocation5], 4
      %s31 = int_to_ptr.vmem [resolvable:$true] %s30
      %36 = dma.hbm_to_vmem [thread:$0]  %s1, 1024, %s31, [#allocation6], 64, 64, 4
    $region9: #{tpu_custom_call.1} parent=1 // pred_fallthru
      _
    // Predicated region
    $region10: #{tpu_custom_call.1} parent=1 // pred_check
      _
    $region11: #{tpu_custom_call.1} parent=1 // pred_check_branch
      %38 = sbr.rel (0) target = $region13
    $region12: #{tpu_custom_call.1} parent=1 // pred_region
      %s40 = ssub.s32 1024, 1024
      %41 = vsyncadd [#allocation6], %s40
      %s42 = sshll.u32 [#allocation7], 4
      %s43 = int_to_ptr.vmem [resolvable:$true] %s42
      %48 = dma.hbm_to_vmem [thread:$0]  %s2, 1024, %s43, [#allocation6], 64, 64, 4
    $region13: #{tpu_custom_call.1} parent=1 // pred_fallthru
      _
    // Predicated region
    $region14: #{tpu_custom_call.1} parent=1 // pred_check
      _
    $region15: #{tpu_custom_call.1} parent=1 // pred_check_branch
      %50 = sbr.rel (0) target = $region17
    $region16: #{tpu_custom_call.1} parent=1 // pred_region
      %s52 = ssub.s32 1024, 1024
      %53 = vsyncadd [#allocation9], %s52
      %s54 = sshll.u32 [#allocation8], 4
      %s55 = int_to_ptr.vmem [resolvable:$true] %s54
      %60 = dma.hbm_to_vmem [thread:$0]  %s3, 1024, %s55, [#allocation9], 64, 64, 4
    $region17: #{tpu_custom_call.1} parent=1 // pred_fallthru
      _
    // Predicated region
    $region18: #{tpu_custom_call.1} parent=1 // pred_check
      _
    $region19: #{tpu_custom_call.1} parent=1 // pred_check_branch
      %62 = sbr.rel (0) target = $region21
    $region20: #{tpu_custom_call.1} parent=1 // pred_region
      %63 = dma.done [#allocation3], 128
    $region21: #{tpu_custom_call.1} parent=1 // pred_fallthru
      _
    // Predicated region
    $region22: #{tpu_custom_call.1} parent=1 // pred_check
      _
    $region23: #{tpu_custom_call.1} parent=1 // pred_check_branch
      %65 = sbr.rel (0) target = $region25
    $region24: #{tpu_custom_call.1} parent=1 // pred_region
      %66 = dma.done [#allocation6], 1024
    $region25: #{tpu_custom_call.1} parent=1 // pred_fallthru
      _
    // Predicated region
    $region26: #{tpu_custom_call.1} parent=1 // pred_check
      _
    $region27: #{tpu_custom_call.1} parent=1 // pred_check_branch
      %68 = sbr.rel (0) target = $region29
    $region28: #{tpu_custom_call.1} parent=1 // pred_region
      %69 = dma.done [#allocation6], 1024
    $region29: #{tpu_custom_call.1} parent=1 // pred_fallthru
      _
    // Predicated region
    $region30: #{tpu_custom_call.1} parent=1 // pred_check
      _
    $region31: #{tpu_custom_call.1} parent=1 // pred_check_branch
      %71 = sbr.rel (0) target = $region33
    $region32: #{tpu_custom_call.1} parent=1 // pred_region
      %72 = dma.done [#allocation9], 1024
    $region33: #{tpu_custom_call.1} parent=1 // pred_fallthru
      _
    %v74 = vld [vmem:[#allocation2] sm:$0xf]
    %v75 = vld [vmem:[#allocation2 + $0x4] sm:$0xf]
    %v76 = vld [vmem:[#allocation5] sm:$0xf]
    %v77 = vld [vmem:[#allocation5 + $0x4] sm:$0xf]
    %v78 = vld [vmem:[#allocation5 + $0x8] sm:$0xf]
    %v79 = vld [vmem:[#allocation5 + $0xc] sm:$0xf]
    %v80 = vld [vmem:[#allocation5 + $0x10] sm:$0xf]
    %v81 = vld [vmem:[#allocation5 + $0x14] sm:$0xf]
    %v82 = vld [vmem:[#allocation5 + $0x18] sm:$0xf]
    %v83 = vld [vmem:[#allocation5 + $0x1c] sm:$0xf]
    %v84 = vld [vmem:[#allocation5 + $0x20] sm:$0xf]
    %v85 = vld [vmem:[#allocation5 + $0x24] sm:$0xf]
    %v86 = vld [vmem:[#allocation5 + $0x28] sm:$0xf]
    %v87 = vld [vmem:[#allocation5 + $0x2c] sm:$0xf]
    %v88 = vld [vmem:[#allocation5 + $0x30] sm:$0xf]
    %v89 = vld [vmem:[#allocation5 + $0x34] sm:$0xf]
    %v90 = vld [vmem:[#allocation5 + $0x38] sm:$0xf]
    %v91 = vld [vmem:[#allocation5 + $0x3c] sm:$0xf]
    %v94 = vunpack.c.l.b16 %v74
    %v95 = vunpack.c.l.b16 %v75
    %v96 = vpack.c.b16 %v95, %v94
    %v114 = vunpack.c.l.b16 %v76
    %v115 = vunpack.c.l.b16 %v77
    %v116 = vunpack.c.l.b16 %v78
    %v117 = vunpack.c.l.b16 %v79
    %v118 = vunpack.c.l.b16 %v80
    %v119 = vunpack.c.l.b16 %v81
    %v120 = vunpack.c.l.b16 %v82
    %v121 = vunpack.c.l.b16 %v83
    %v122 = vunpack.c.l.b16 %v84
    %v123 = vunpack.c.l.b16 %v85
    %v124 = vunpack.c.l.b16 %v86
    %v125 = vunpack.c.l.b16 %v87
    %v126 = vunpack.c.l.b16 %v88
    %v127 = vunpack.c.l.b16 %v89
    %v128 = vunpack.c.l.b16 %v90
    %v129 = vunpack.c.l.b16 %v91
    %v130 = vpack.c.b16 %v115, %v114
    %v131 = vpack.c.b16 %v117, %v116
    %v132 = vpack.c.b16 %v119, %v118
    %v133 = vpack.c.b16 %v121, %v120
    %v134 = vpack.c.b16 %v123, %v122
    %v135 = vpack.c.b16 %v125, %v124
    %v136 = vpack.c.b16 %v127, %v126
    %v137 = vpack.c.b16 %v129, %v128
    %146 = vmatprep.subr.bf16.mxu0 0
    %147 = vmatpush1.bf16.msra.mxu0 %v130
    %148 = vmatprep.subr.bf16.mxu0 0
    %149 = vmatpush1.bf16.msra.mxu0 %v131
    %150 = vmatprep.subr.bf16.mxu0 0
    %151 = vmatpush1.bf16.msra.mxu0 %v132
    %152 = vmatprep.subr.bf16.mxu0 0
    %153 = vmatpush1.bf16.msra.mxu0 %v133
    %154 = vmatprep.subr.bf16.mxu0 0
    %155 = vmatpush1.bf16.msra.mxu0 %v134
    %156 = vmatprep.subr.bf16.mxu0 0
    %157 = vmatpush1.bf16.msra.mxu0 %v135
    %158 = vmatprep.subr.bf16.mxu0 0
    %159 = vmatpush1.bf16.msra.mxu0 %v136
    %160 = vmatprep.subr.bf16.mxu0 0
    %161 = vmatpush1.bf16.msra.mxu0 %v137
    %162 = vmatprep.subr.bf16.mxu0 0
    %163 = vmatpush1.bf16.msra.mxu0 0
    %164 = vmatprep.subr.bf16.mxu0 0
    %165 = vmatpush1.bf16.msra.mxu0 0
    %166 = vmatprep.subr.bf16.mxu0 0
    %167 = vmatpush1.bf16.msra.mxu0 0
    %168 = vmatprep.subr.bf16.mxu0 0
    %169 = vmatpush1.bf16.msra.mxu0 0
    %170 = vmatprep.subr.bf16.mxu0 0
    %171 = vmatpush1.bf16.msra.mxu0 0
    %172 = vmatprep.subr.bf16.mxu0 0
    %173 = vmatpush1.bf16.msra.mxu0 0
    %174 = vmatprep.subr.bf16.mxu0 0
    %175 = vmatpush1.bf16.msra.mxu0 0
    %176 = vmatprep.subr.bf16.mxu0 0
    %177 = vmatpush1.bf16.msra.mxu0 0
    %178 = vmatprep.mubr.bf16.mxu0 0
    %179 = vmatmul.mubr.bf16.gmra.mrb[0].mxu0 %v96
    %v180 = vpop.f32.mrb[0].mxu0
    %v181 = vadd.f32 0.0, %v180
    %v182 = vpop.f32.mrb[0].mxu0
    %v183 = vpop.f32.mrb[0].mxu0
    %v184 = vadd.f32 0.0, %v183
    %v185 = vpop.f32.mrb[0].mxu0
    %186 = vdwg.mxu0
    %v187 = vpack.c.bf16 %v184, %v181
    %v188 = vld [vmem:[#allocation7] sm:$0xf]
    %v189 = vld [vmem:[#allocation7 + $0x4] sm:$0xf]
    %v190 = vld [vmem:[#allocation7 + $0x8] sm:$0xf]
    %v191 = vld [vmem:[#allocation7 + $0xc] sm:$0xf]
    %v192 = vld [vmem:[#allocation7 + $0x10] sm:$0xf]
    %v193 = vld [vmem:[#allocation7 + $0x14] sm:$0xf]
    %v194 = vld [vmem:[#allocation7 + $0x18] sm:$0xf]
    %v195 = vld [vmem:[#allocation7 + $0x1c] sm:$0xf]
    %v196 = vld [vmem:[#allocation7 + $0x20] sm:$0xf]
    %v197 = vld [vmem:[#allocation7 + $0x24] sm:$0xf]
    %v198 = vld [vmem:[#allocation7 + $0x28] sm:$0xf]
    %v199 = vld [vmem:[#allocation7 + $0x2c] sm:$0xf]
    %v200 = vld [vmem:[#allocation7 + $0x30] sm:$0xf]
    %v201 = vld [vmem:[#allocation7 + $0x34] sm:$0xf]
    %v202 = vld [vmem:[#allocation7 + $0x38] sm:$0xf]
    %v203 = vld [vmem:[#allocation7 + $0x3c] sm:$0xf]
    %v220 = vunpack.c.l.b16 %v188
    %v221 = vunpack.c.l.b16 %v189
    %v222 = vunpack.c.l.b16 %v190
    %v223 = vunpack.c.l.b16 %v191
    %v224 = vunpack.c.l.b16 %v192
    %v225 = vunpack.c.l.b16 %v193
    %v226 = vunpack.c.l.b16 %v194
    %v227 = vunpack.c.l.b16 %v195
    %v228 = vunpack.c.l.b16 %v196
    %v229 = vunpack.c.l.b16 %v197
    %v230 = vunpack.c.l.b16 %v198
    %v231 = vunpack.c.l.b16 %v199
    %v232 = vunpack.c.l.b16 %v200
    %v233 = vunpack.c.l.b16 %v201
    %v234 = vunpack.c.l.b16 %v202
    %v235 = vunpack.c.l.b16 %v203
    %v236 = vpack.c.b16 %v221, %v220
    %v237 = vpack.c.b16 %v223, %v222
    %v238 = vpack.c.b16 %v225, %v224
    %v239 = vpack.c.b16 %v227, %v226
    %v240 = vpack.c.b16 %v229, %v228
    %v241 = vpack.c.b16 %v231, %v230
    %v242 = vpack.c.b16 %v233, %v232
    %v243 = vpack.c.b16 %v235, %v234
    %252 = vmatprep.subr.bf16.mxu0 0
    %253 = vmatpush1.bf16.msra.mxu0 %v236
    %254 = vmatprep.subr.bf16.mxu0 0
    %255 = vmatpush1.bf16.msra.mxu0 %v237
    %256 = vmatprep.subr.bf16.mxu0 0
    %257 = vmatpush1.bf16.msra.mxu0 %v238
    %258 = vmatprep.subr.bf16.mxu0 0
    %259 = vmatpush1.bf16.msra.mxu0 %v239
    %260 = vmatprep.subr.bf16.mxu0 0
    %261 = vmatpush1.bf16.msra.mxu0 %v240
    %262 = vmatprep.subr.bf16.mxu0 0
    %263 = vmatpush1.bf16.msra.mxu0 %v241
    %264 = vmatprep.subr.bf16.mxu0 0
    %265 = vmatpush1.bf16.msra.mxu0 %v242
    %266 = vmatprep.subr.bf16.mxu0 0
    %267 = vmatpush1.bf16.msra.mxu0 %v243
    %268 = vmatprep.subr.bf16.mxu0 0
    %269 = vmatpush1.bf16.msra.mxu0 0
    %270 = vmatprep.subr.bf16.mxu0 0
    %271 = vmatpush1.bf16.msra.mxu0 0
    %272 = vmatprep.subr.bf16.mxu0 0
    %273 = vmatpush1.bf16.msra.mxu0 0
    %274 = vmatprep.subr.bf16.mxu0 0
    %275 = vmatpush1.bf16.msra.mxu0 0
    %276 = vmatprep.subr.bf16.mxu0 0
    %277 = vmatpush1.bf16.msra.mxu0 0
    %278 = vmatprep.subr.bf16.mxu0 0
    %279 = vmatpush1.bf16.msra.mxu0 0
    %280 = vmatprep.subr.bf16.mxu0 0
    %281 = vmatpush1.bf16.msra.mxu0 0
    %282 = vmatprep.subr.bf16.mxu0 0
    %283 = vmatpush1.bf16.msra.mxu0 0
    %284 = vmatprep.mubr.bf16.mxu0 0
    %285 = vmatmul.mubr.bf16.gmra.mrb[0].mxu0 %v187
    %v286 = vpop.f32.mrb[0].mxu0
    %v287 = vadd.f32 0.0, %v286
    %v288 = vpop.f32.mrb[0].mxu0
    %v289 = vpop.f32.mrb[0].mxu0
    %v290 = vadd.f32 0.0, %v289
    %v291 = vpop.f32.mrb[0].mxu0
    %292 = vdwg.mxu0
    %v293 = vpack.c.bf16 %v290, %v287
    %v294 = vld [vmem:[#allocation8] sm:$0xf]
    %v295 = vld [vmem:[#allocation8 + $0x4] sm:$0xf]
    %v296 = vld [vmem:[#allocation8 + $0x8] sm:$0xf]
    %v297 = vld [vmem:[#allocation8 + $0xc] sm:$0xf]
    %v298 = vld [vmem:[#allocation8 + $0x10] sm:$0xf]
    %v299 = vld [vmem:[#allocation8 + $0x14] sm:$0xf]
    %v300 = vld [vmem:[#allocation8 + $0x18] sm:$0xf]
    %v301 = vld [vmem:[#allocation8 + $0x1c] sm:$0xf]
    %v302 = vld [vmem:[#allocation8 + $0x20] sm:$0xf]
    %v303 = vld [vmem:[#allocation8 + $0x24] sm:$0xf]
    %v304 = vld [vmem:[#allocation8 + $0x28] sm:$0xf]
    %v305 = vld [vmem:[#allocation8 + $0x2c] sm:$0xf]
    %v306 = vld [vmem:[#allocation8 + $0x30] sm:$0xf]
    %v307 = vld [vmem:[#allocation8 + $0x34] sm:$0xf]
    %v308 = vld [vmem:[#allocation8 + $0x38] sm:$0xf]
    %v309 = vld [vmem:[#allocation8 + $0x3c] sm:$0xf]
    %v326 = vunpack.c.l.b16 %v294
    %v327 = vunpack.c.l.b16 %v295
    %v328 = vunpack.c.l.b16 %v296
    %v329 = vunpack.c.l.b16 %v297
    %v330 = vunpack.c.l.b16 %v298
    %v331 = vunpack.c.l.b16 %v299
    %v332 = vunpack.c.l.b16 %v300
    %v333 = vunpack.c.l.b16 %v301
    %v334 = vunpack.c.l.b16 %v302
    %v335 = vunpack.c.l.b16 %v303
    %v336 = vunpack.c.l.b16 %v304
    %v337 = vunpack.c.l.b16 %v305
    %v338 = vunpack.c.l.b16 %v306
    %v339 = vunpack.c.l.b16 %v307
    %v340 = vunpack.c.l.b16 %v308
    %v341 = vunpack.c.l.b16 %v309
    %v342 = vpack.c.b16 %v327, %v326
    %v343 = vpack.c.b16 %v329, %v328
    %v344 = vpack.c.b16 %v331, %v330
    %v345 = vpack.c.b16 %v333, %v332
    %v346 = vpack.c.b16 %v335, %v334
    %v347 = vpack.c.b16 %v337, %v336
    %v348 = vpack.c.b16 %v339, %v338
    %v349 = vpack.c.b16 %v341, %v340
    %358 = vmatprep.subr.bf16.mxu0 0
    %359 = vmatpush1.bf16.msra.mxu0 %v342
    %360 = vmatprep.subr.bf16.mxu0 0
    %361 = vmatpush1.bf16.msra.mxu0 %v343
    %362 = vmatprep.subr.bf16.mxu0 0
    %363 = vmatpush1.bf16.msra.mxu0 %v344
    %364 = vmatprep.subr.bf16.mxu0 0
    %365 = vmatpush1.bf16.msra.mxu0 %v345
    %366 = vmatprep.subr.bf16.mxu0 0
    %367 = vmatpush1.bf16.msra.mxu0 %v346
    %368 = vmatprep.subr.bf16.mxu0 0
    %369 = vmatpush1.bf16.msra.mxu0 %v347
    %370 = vmatprep.subr.bf16.mxu0 0
    %371 = vmatpush1.bf16.msra.mxu0 %v348
    %372 = vmatprep.subr.bf16.mxu0 0
    %373 = vmatpush1.bf16.msra.mxu0 %v349
    %374 = vmatprep.subr.bf16.mxu0 0
    %375 = vmatpush1.bf16.msra.mxu0 0
    %376 = vmatprep.subr.bf16.mxu0 0
    %377 = vmatpush1.bf16.msra.mxu0 0
    %378 = vmatprep.subr.bf16.mxu0 0
    %379 = vmatpush1.bf16.msra.mxu0 0
    %380 = vmatprep.subr.bf16.mxu0 0
    %381 = vmatpush1.bf16.msra.mxu0 0
    %382 = vmatprep.subr.bf16.mxu0 0
    %383 = vmatpush1.bf16.msra.mxu0 0
    %384 = vmatprep.subr.bf16.mxu0 0
    %385 = vmatpush1.bf16.msra.mxu0 0
    %386 = vmatprep.subr.bf16.mxu0 0
    %387 = vmatpush1.bf16.msra.mxu0 0
    %388 = vmatprep.subr.bf16.mxu0 0
    %389 = vmatpush1.bf16.msra.mxu0 0
    %390 = vmatprep.mubr.bf16.mxu0 0
    %391 = vmatmul.mubr.bf16.gmra.mrb[0].mxu0 %v293
    %v392 = vpop.f32.mrb[0].mxu0
    %v393 = vadd.f32 0.0, %v392
    %v394 = vpop.f32.mrb[0].mxu0
    %v395 = vpop.f32.mrb[0].mxu0
    %v396 = vadd.f32 0.0, %v395
    %v397 = vpop.f32.mrb[0].mxu0
    %398 = vdwg.mxu0
    %399 = vst [vmem:[#allocation10] sm:$0xff] %v393
    %400 = vst [vmem:[#allocation10 + $0x8] sm:$0xff] %v396
    // Predicated region
    $region34: #{tpu_custom_call.1} parent=1 // pred_check
      _
    $region35: #{tpu_custom_call.1} parent=1 // pred_check_branch
      %402 = sbr.rel (0) target = $region37
    $region36: #{tpu_custom_call.1} parent=1 // pred_region
      %s404 = ssub.s32 256, 256
      %405 = vsyncadd [#allocation4], %s404
      %s406 = sshll.u32 [#allocation10], 4
      %s407 = int_to_ptr.vmem [resolvable:$true] %s406
      %412 = dma.vmem_to_hbm [thread:$0]  %s407, 256, %s4, [#allocation4], 128, 128, 8
    $region37: #{tpu_custom_call.1} parent=1 // pred_fallthru
      _
    // Predicated region
    $region38: #{tpu_custom_call.1} parent=1 // pred_check
      _
    $region39: #{tpu_custom_call.1} parent=1 // pred_check_branch
      %414 = sbr.rel (0) target = $region41
    $region40: #{tpu_custom_call.1} parent=1 // pred_region
      %415 = dma.done [#allocation4], 256
    $region41: #{tpu_custom_call.1} parent=1 // pred_fallthru
      _
    %416 = vsyncpa [#allocation3], 1
    %417 = vsyncpa [#allocation6], 1
    %418 = vsyncpa [#allocation9], 1
    %419 = vsyncpa [#allocation4], 1

</llo_original>
